<compile_context>
chip_gen: v7x
topology: tpu7x:2x2x1
jax: 0.10.0
libtpu: 0.0.40
codegen_flags: <defaults>
</compile_context>

<pallas_src>
import functools

import jax
import jax.numpy as jnp
from jax.experimental import pallas as pl
from jax.experimental.pallas import tpu as pltpu


# ------------------------- sizing helpers -------------------------

def _round_up(x, m):
    return ((x + m - 1) // m) * m


def _vmem_budget_bytes():
    # Conservative per-TensorCore budget; stays well under v7x's 64 MiB.
    cap = 64 << 20
    try:
        cap = int(pltpu.get_tpu_info().vmem_capacity_bytes)
    except Exception:
        pass
    return int(min(cap * 5 // 8, 40 << 20))


def _footprint_bytes(tm, tk, tn, k_tiled):
    x_bytes = 2 * tm * tk * 4                         # f32 activations, double-buffered
    w_bytes = (2 if k_tiled else 1) * tk * tn * 2     # bf16 weight (single-buffered when resident)
    b_bytes = 1 * tn * 4                              # bias, single-buffered
    o_bytes = 2 * tm * tn * 4                         # f32 output, double-buffered
    acc = tm * tn * 4 if k_tiled else 0               # resident accumulator
    return x_bytes + w_bytes + b_bytes + o_bytes + acc


def _select_tiles(M, K, N, budget):
    """Pick (tm, tk, tn): prefer a full-N resident weight and tm up to 256."""
    mp16 = _round_up(M, 16)
    tm_opts = [t for t in (256, 128, 64, 32, 16) if t <= mp16]
    if mp16 < 256 and mp16 not in tm_opts:
        tm_opts.insert(0, mp16)
    if not tm_opts:
        tm_opts = [mp16]
    tn_opts = [N] + [t for t in (2048, 1024, 512, 256, 128)
                     if t < N and N % t == 0]
    tk_opts = [(K, False)] + [(t, True) for t in (2048, 1024, 512, 256, 128)
                              if t < K and K % t == 0]
    for tk, k_tiled in tk_opts:
        for tn in tn_opts:
            for tm in tm_opts:
                if _footprint_bytes(tm, tk, tn, k_tiled) <= budget:
                    return tm, tk, tn
    return tm_opts[-1], tk_opts[-1][0], tn_opts[-1]   # last resort


# ------------------------- Pallas kernels -------------------------

def _linear_bias_kernel(x_ref, w_ref, b_ref, o_ref):
    # x: (tm, K) f32 (cast to bf16 in VMEM); w: (K, tn) bf16; b: (1, tn) f32.
    acc = jnp.dot(x_ref[...].astype(jnp.bfloat16), w_ref[...],
                  preferred_element_type=jnp.float32)
    o_ref[...] = (acc + b_ref[...]).astype(o_ref.dtype)


def _linear_bias_kernel_ktiled(x_ref, w_ref, b_ref, o_ref, acc_ref):
    k = pl.program_id(3)

    @pl.when(k == 0)
    def _init():
        acc_ref[...] = jnp.zeros_like(acc_ref)

    acc_ref[...] += jnp.dot(x_ref[...].astype(jnp.bfloat16), w_ref[...],
                            preferred_element_type=jnp.float32)

    @pl.when(k == pl.num_programs(3) - 1)
    def _finish():
        o_ref[...] = (acc_ref[...] + b_ref[...]).astype(o_ref.dtype)


def stacked_linear_pallas(xs, ws, bs, *, out_dtype=jnp.float32):
    """y[l] = xs[l] @ ws[l] + bs[l] for every layer l in a single pallas_call.

    xs: (L, M, K) f32   -- batch/seq folded into M
    ws: (L, K, N) bf16  -- pre-transposed, pre-cast (prepare_params)
    bs: (L, 1, N) f32
    returns (L, M, N) out_dtype
    """
    L, M, K = xs.shape
    N = ws.shape[-1]

    budget = _vmem_budget_bytes()
    tm, tk, tn = _select_tiles(M, K, N, budget)
    k_tiled = tk < K

    Mp = _round_up(M, tm)
    if Mp != M:
        xs = jnp.pad(xs, ((0, 0), (0, Mp - M), (0, 0)))

    nm = Mp // tm
    nn = pl.cdiv(N, tn)
    nk = pl.cdiv(K, tk) if k_tiled else 1

    footprint = _footprint_bytes(tm, tk, tn, k_tiled)
    vmem_limit = int(min(max(footprint + (4 << 20), 16 << 20), 64 << 20))
    cost = pl.CostEstimate(
        flops=2 * L * Mp * K * N,
        transcendentals=0,
        bytes_accessed=L * (Mp * K * 4 + K * N * 2 + N * 4 + Mp * N * 4))

    if not k_tiled:
        grid = (L, nn, nm)
        in_specs = [
            pl.BlockSpec((pl.Squeezed(), tm, K), lambda l, n, m: (l, m, 0)),
            # Block index constant across the inner M axis -> single-buffered,
            # weight DMA'd once per (layer, n) and kept VMEM-resident.
            pl.BlockSpec((pl.Squeezed(), K, tn), lambda l, n, m: (l, 0, n),
                         pipeline_mode=pl.Buffered(1)),
            pl.BlockSpec((pl.Squeezed(), 1, tn), lambda l, n, m: (l, 0, n),
                         pipeline_mode=pl.Buffered(1)),
        ]
        out_specs = pl.BlockSpec((pl.Squeezed(), tm, tn),
                                 lambda l, n, m: (l, m, n))
        kernel = _linear_bias_kernel
        scratch = []
        sem = ("parallel", "parallel", "parallel")
    else:
        grid = (L, nn, nm, nk)                       # reduction axis last
        in_specs = [
            pl.BlockSpec((pl.Squeezed(), tm, tk), lambda l, n, m, k: (l, m, k)),
            pl.BlockSpec((pl.Squeezed(), tk, tn), lambda l, n, m, k: (l, k, n)),
            pl.BlockSpec((pl.Squeezed(), 1, tn), lambda l, n, m, k: (l, 0, n),
                         pipeline_mode=pl.Buffered(1)),
        ]
        out_specs = pl.BlockSpec((pl.Squeezed(), tm, tn),
                                 lambda l, n, m, k: (l, m, n))
        kernel = _linear_bias_kernel_ktiled
        scratch = [pltpu.VMEM((tm, tn), jnp.float32)]
        sem = ("parallel", "parallel", "parallel", "arbitrary")

    out = pl.pallas_call(
        kernel,
        out_shape=jax.ShapeDtypeStruct((L, Mp, N), out_dtype),
        grid=grid,
        in_specs=in_specs,
        out_specs=out_specs,
        scratch_shapes=scratch,
        compiler_params=pltpu.CompilerParams(
            dimension_semantics=sem, vmem_limit_bytes=vmem_limit),
        cost_estimate=cost,
    )(xs, ws, bs)

    if Mp != M:
        out = out[:, :M, :]
    return out


# ------------------------- module forward -------------------------

def prepare_params(params):
    """One-time weight prep (call once, OUTSIDE the per-forward jit).

    params[i] = (W, b) in PyTorch nn.Linear layout: W (dim_out, dim_in),
    b (dim_out,). Returns stacked pre-transposed bf16 weights (L, dim_in, Np),
    stacked f32 biases (L, 1, Np), and the true dim_out (Np is lane-padded to
    a multiple of 128 so the output stores are unmasked).
    """
    n_out = params[0][0].shape[0]
    n_pad = _round_up(n_out, 128)
    ws, bs = [], []
    for W, b in params:
        w_t = jnp.transpose(W).astype(jnp.bfloat16)       # (dim_in, dim_out)
        b2 = b.astype(jnp.float32).reshape(1, -1)
        if n_pad != n_out:
            w_t = jnp.pad(w_t, ((0, 0), (0, n_pad - n_out)))
            b2 = jnp.pad(b2, ((0, 0), (0, n_pad - n_out)))
        ws.append(w_t)
        bs.append(b2)
    return jnp.stack(ws), jnp.stack(bs), n_out


def linear_layer_forward(tokens, ws, bs, *, n_out):
    """Pallas equivalent of LinearLayer.forward.

    tokens[i] 3-D (B, S, D):   CLS token dropped, then Linear.
    tokens[i] 4-D (B, C, H, W): flattened/permuted to (B, HW, C), then Linear.
    """
    folded, meta = [], []
    for t in tokens:
        if t.ndim == 3:
            B, S, D = t.shape
            x2 = t[:, 1:, :].reshape(B * (S - 1), D)
            meta.append((B, S - 1))
        else:
            B, C, H, Wd = t.shape
            x2 = jnp.transpose(t.reshape(B, C, H * Wd), (0, 2, 1))
            x2 = x2.reshape(B * H * Wd, C)
            meta.append((B, H * Wd))
        folded.append(x2)

    outs = [None] * len(tokens)
    if len({x.shape for x in folded}) == 1:
        # Fused path: one pallas_call with a leading grid axis over layers.
        xs = jnp.stack(folded)                              # (L, M, K)
        ys = stacked_linear_pallas(xs, ws, bs)              # (L, M, Npad)
        for i, (B, S) in enumerate(meta):
            outs[i] = ys[i, :, :n_out].reshape(B, S, n_out)
    else:
        # Per-layer fallback (L = 1 per call) when folded shapes differ.
        for i, ((B, S), x2) in enumerate(zip(meta, folded)):
            y = stacked_linear_pallas(x2[None], ws[i:i + 1], bs[i:i + 1])
            outs[i] = y[0, :, :n_out].reshape(B, S, n_out)
    return outs


def reference_forward(tokens, params):
    # Pure-JAX f32 reference of the PyTorch forward (validation only).
    outs = []
    for i, t in enumerate(tokens):
        W, b = params[i]
        if t.ndim == 3:
            x = t[:, 1:, :]
        else:
            B, C, H, Wd = t.shape
            x = jnp.transpose(t.reshape(B, C, H * Wd), (0, 2, 1))
        outs.append(jnp.einsum('bnd,od->bno', x, W) + b)
    return outs


def init_params(key, dim_in, dim_out, n_layers):
    params = []
    for _ in range(n_layers):
        key, wk, bk = jax.random.split(key, 3)
        W = jax.random.normal(wk, (dim_out, dim_in), jnp.float32) / jnp.sqrt(dim_in)
        b = 0.01 * jax.random.normal(bk, (dim_out,), jnp.float32)
        params.append((W, b))
    return params


if __name__ == "__main__":
    key = jax.random.PRNGKey(0)
    pkey, k0, k1 = jax.random.split(key, 3)

    dim_in, dim_out = 128, 256
    params = init_params(pkey, dim_in, dim_out, 2)

    # One-time weight prep (transpose / bf16 cast / lane pad / stack) is done
    # once here, NOT inside the per-forward jit.
    ws, bs, n_out = prepare_params(params)
    ws, bs = jax.block_until_ready((ws, bs))

    # Two token tensors exercising both branches of LinearLayer.forward:
    #   tokens[0]: ViT-style (B, 1+seq, D)   -> CLS token dropped, then Linear
    #   tokens[1]: feature map (B, C, H, W)  -> flattened/permuted, then Linear
    tokens = [
        jax.random.normal(k0, (2, 17, dim_in), dtype=jnp.float32),
        jax.random.normal(k1, (2, dim_in, 4, 4), dtype=jnp.float32),
    ]

    fwd = jax.jit(functools.partial(linear_layer_forward, n_out=n_out))
    out = jax.block_until_ready(fwd(tokens, ws, bs))
    assert out[0].shape == (2, 16, dim_out) and out[0].dtype == jnp.float32
    assert out[1].shape == (2, 16, dim_out) and out[1].dtype == jnp.float32

    ref = jax.block_until_ready(jax.jit(reference_forward)(tokens, params))
    for o, r in zip(out, ref):
        err = float(jnp.max(jnp.abs(o - r)) / (jnp.max(jnp.abs(r)) + 1e-6))
        # bf16 weight/activation MXU feed with f32 accumulation -> ~1e-3 rel err.
        assert err < 2e-2, f"mismatch vs reference: normalized max err {err}"

    print("KERNEL_OK")
</pallas_src>

<mosaic_0001>
module attributes {stable_mosaic.version = 11 : i64} {
  func.func @_linear_bias_kernel(%arg0: i32, %arg1: i32, %arg2: i32, %arg3: memref<1x32x128xf32, #tpu.memory_space<vmem>>, %arg4: memref<1x128x256xbf16, #tpu.memory_space<vmem>>, %arg5: memref<1x1x256xf32, #tpu.memory_space<vmem>>, %arg6: memref<1x32x256xf32, #tpu.memory_space<vmem>>) attributes {dimension_semantics = [#tpu.dimension_semantics<parallel>, #tpu.dimension_semantics<parallel>, #tpu.dimension_semantics<parallel>], iteration_bounds = array<i64: 2, 1, 1>, scalar_prefetch = 0 : i64, scratch_operands = 0 : i64, tpu.core_type = #tpu.core_type<tc>, window_params = [{transform_indices = @transform_0, window_bounds = array<i64: 1, 32, 128>}, {pipeline_mode = #tpu.pipeline_mode<synchronous>, transform_indices = @transform_1, window_bounds = array<i64: 1, 128, 256>}, {pipeline_mode = #tpu.pipeline_mode<synchronous>, transform_indices = @transform_2, window_bounds = array<i64: 1, 1, 256>}, {transform_indices = @transform_3, window_bounds = array<i64: 1, 32, 256>}]} {
    %c0 = arith.constant 0 : index
    %c0_0 = arith.constant 0 : index
    %c0_1 = arith.constant 0 : index
    %0 = vector.load %arg3[%c0, %c0_0, %c0_1] : memref<1x32x128xf32, #tpu.memory_space<vmem>>, vector<1x32x128xf32>
    %1 = vector.shape_cast %0 : vector<1x32x128xf32> to vector<32x128xf32>
    %2 = arith.truncf %1 : vector<32x128xf32> to vector<32x128xbf16>
    %c0_2 = arith.constant 0 : index
    %c0_3 = arith.constant 0 : index
    %c0_4 = arith.constant 0 : index
    %3 = vector.load %arg4[%c0_2, %c0_3, %c0_4] : memref<1x128x256xbf16, #tpu.memory_space<vmem>>, vector<1x128x256xbf16>
    %4 = vector.shape_cast %3 : vector<1x128x256xbf16> to vector<128x256xbf16>
    %cst = arith.constant dense<0.000000e+00> : vector<32x256xf32>
    %5 = tpu.matmul %2, %4, %cst {dimension_numbers = #tpu.dot_dimension_numbers<[1], [0], [0], [1], [0, 0, 1, 1], [], []>} : vector<32x128xbf16>, vector<128x256xbf16>, vector<32x256xf32> -> vector<32x256xf32>
    %c0_5 = arith.constant 0 : index
    %c0_6 = arith.constant 0 : index
    %c0_7 = arith.constant 0 : index
    %6 = vector.load %arg5[%c0_5, %c0_6, %c0_7] : memref<1x1x256xf32, #tpu.memory_space<vmem>>, vector<1x1x256xf32>
    %7 = vector.shape_cast %6 : vector<1x1x256xf32> to vector<1x256xf32>
    %8 = vector.broadcast %7 : vector<1x256xf32> to vector<32x256xf32>
    %9 = arith.addf %5, %8 : vector<32x256xf32>
    %c0_8 = arith.constant 0 : index
    %c0_9 = arith.constant 0 : index
    %c0_10 = arith.constant 0 : index
    %10 = vector.load %arg6[%c0_8, %c0_9, %c0_10] : memref<1x32x256xf32, #tpu.memory_space<vmem>>, vector<1x32x256xf32>
    %11 = vector.shape_cast %10 : vector<1x32x256xf32> to vector<32x256xf32>
    %12 = vector.shape_cast %9 : vector<32x256xf32> to vector<1x32x256xf32>
    tpu.vector_store %arg6[%c0_8, %c0_9, %c0_10], %12 {strides = array<i32>} : memref<1x32x256xf32, #tpu.memory_space<vmem>>, vector<1x32x256xf32>,
    return
  }
  func.func @transform_0(%arg0: i32, %arg1: i32, %arg2: i32) -> (i32, i32, i32) {
    %c0_i32 = arith.constant 0 : i32
    %c0_i32_0 = arith.constant 0 : i32
    return %arg0, %arg2, %c0_i32 : i32, i32, i32
  }
  func.func @transform_1(%arg0: i32, %arg1: i32, %arg2: i32) -> (i32, i32, i32) {
    %c0_i32 = arith.constant 0 : i32
    %c0_i32_0 = arith.constant 0 : i32
    return %arg0, %c0_i32, %arg1 : i32, i32, i32
  }
  func.func @transform_2(%arg0: i32, %arg1: i32, %arg2: i32) -> (i32, i32, i32) {
    %c0_i32 = arith.constant 0 : i32
    %c0_i32_0 = arith.constant 0 : i32
    return %arg0, %c0_i32, %arg1 : i32, i32, i32
  }
  func.func @transform_3(%arg0: i32, %arg1: i32, %arg2: i32) -> (i32, i32, i32) {
    %c0_i32 = arith.constant 0 : i32
    return %arg0, %arg2, %arg1 : i32, i32, i32
  }
}

</mosaic_0001>

<llo_original>
// kernel: linear_layer_forward.1
$region0: #{linear_layer_forward.1}
  #allocation0 [shape = 'u32[]', space=smem, size = 0x4, offset = 0x4, fixed_abs, tag = 'smem constant byte address 0x4 - core index']
  #allocation1 [shape = 'u32[144,128]{1,0:T(1,128)}', space=vmem, size = 0x12000, scoped, tag = 'internal scratch']
  %s0 = inlined_call_operand.vmem [shape: f32[2,32,128], index: 0, kind: input, shape index: {}]
  %s1 = inlined_call_operand.vmem [shape: bf16[2,128,256], index: 1, kind: input, shape index: {}]
  %s2 = inlined_call_operand.vmem [shape: f32[2,1,256], index: 2, kind: input, shape index: {}]
  %s3 = inlined_call_operand.vmem [shape: f32[2,32,256], index: 3, kind: output, shape index: {}]
  %s4 = sld [smem:[#allocation0]]
  $region45: #{linear_layer_forward.1} parent=0
    _
  %s6 = ssub.s32 1, %s4
  %s7 = scalar_select 0, %s6, %s4
  loop: start=0, step=1, limit=4
  $region2: #{linear_layer_forward.1} parent=0 // loop_pre_header
    _
  $region3: #{linear_layer_forward.1} parent=0 // loop_header
    %s9 = sphi 0, %s13
    %p10 = scmp.ge.s32.totalorder %s9, 4
    %s16 = sphi 0, %s35
    %s17 = sphi 0, %s31
    %s18 = sphi 0, %s27
    %s19 = sphi 0, %s16
    %s20 = sphi 0, %s17
    %s21 = sphi 0, %s18
    %s22 = sphi 0, %s19
    %s23 = sphi 0, %s20
    %s24 = sphi 0, %s21
    %s40 = sphi 0, %s42
    %s43 = sphi 0, %s40
    %s44 = sphi 0, %s43
    %s60 = sphi 0, %s44
    %s68 = sphi 0, %s70
    %s71 = sphi 0, %s68
    %s72 = sphi 0, %s71
    %s88 = sphi 0, %s72
    %s96 = sphi 0, %s98
    %s99 = sphi 0, %s96
    %s100 = sphi 0, %s99
    %s116 = sphi 0, %s100
    %s126 = sphi 0, %s128
    %s129 = sphi 0, %s126
    %s130 = sphi 0, %s129
    %s146 = sphi 0, %s130
  $region4: #{linear_layer_forward.1} parent=0 // loop_header_branch
    %12 = sbr.rel (%p10) target = $region8
  $region5: #{linear_layer_forward.1} parent=0 // loop_body
    %s14 = ssub.s32 %s9, 1
    %s15 = ssub.s32 %s9, 2
    %s25 = sadd.s32 1, %s18
    %p26 = scmp.ge.s32.totalorder %s25, 1
    %s27 = scalar_select %p26, 0, %s25
    %s28 = sadd.s32 1, %s17
    %s29 = scalar_select %p26, %s28, %s17
    %p30 = scmp.ge.s32.totalorder %s29, 1
    %s31 = scalar_select %p30, 0, %s29
    %s32 = sadd.s32 1, %s16
    %s33 = scalar_select %p30, %s32, %s16
    %p34 = scmp.ge.s32.totalorder %s33, 2
    %s35 = scalar_select %p34, 0, %s33
    %s36 = ssub.s32 %s16, %s35
    %s37 = ssub.s32 %s18, %s27
    %s38 = sor.u32 %s36, %s37
    %p39 = scmp.eq.s32.totalorder %s38, 0
    %s41 = sadd.s32 %s40, 1
    %s42 = scalar_select %p39, %s40, %s41
    %p45 = pneg %p39
    %p46 = scmp.eq.s32.totalorder %s9, 1
    %p47 = por %p45, %p46
    %p48 = scmp.ne.s32.totalorder %s40, %s43
    %p49 = scmp.eq.s32.totalorder %s9, 0
    %p50 = por %p48, %p49
    %p51 = scmp.ne.s32.totalorder %s40, %s43
    %p52 = scmp.eq.s32.totalorder %s14, 1
    %p53 = por %p51, %p52
    %p54 = scmp.ne.s32.totalorder %s43, %s44
    %p55 = scmp.eq.s32.totalorder %s14, 0
    %p56 = por %p54, %p55
    %p57 = scmp.ne.s32.totalorder %s43, %s44
    %p58 = scmp.eq.s32.totalorder %s15, 1
    %p59 = por %p57, %p58
    %p61 = scmp.ne.s32.totalorder %s44, %s60
    %p62 = scmp.eq.s32.totalorder %s15, 0
    %p63 = por %p61, %p62
    %s64 = ssub.s32 %s16, %s35
    %s65 = ssub.s32 %s17, %s31
    %s66 = sor.u32 %s64, %s65
    %p67 = scmp.eq.s32.totalorder %s66, 0
    %s69 = sadd.s32 %s68, 1
    %s70 = scalar_select %p67, %s68, %s69
    %p73 = pneg %p67
    %p74 = scmp.eq.s32.totalorder %s9, 1
    %p75 = por %p73, %p74
    %p76 = scmp.ne.s32.totalorder %s68, %s71
    %p77 = scmp.eq.s32.totalorder %s9, 0
    %p78 = por %p76, %p77
    %p79 = scmp.ne.s32.totalorder %s68, %s71
    %p80 = scmp.eq.s32.totalorder %s14, 1
    %p81 = por %p79, %p80
    %p82 = scmp.ne.s32.totalorder %s71, %s72
    %p83 = scmp.eq.s32.totalorder %s14, 0
    %p84 = por %p82, %p83
    %p85 = scmp.ne.s32.totalorder %s71, %s72
    %p86 = scmp.eq.s32.totalorder %s15, 1
    %p87 = por %p85, %p86
    %p89 = scmp.ne.s32.totalorder %s72, %s88
    %p90 = scmp.eq.s32.totalorder %s15, 0
    %p91 = por %p89, %p90
    %s92 = ssub.s32 %s16, %s35
    %s93 = ssub.s32 %s17, %s31
    %s94 = sor.u32 %s92, %s93
    %p95 = scmp.eq.s32.totalorder %s94, 0
    %s97 = sadd.s32 %s96, 1
    %s98 = scalar_select %p95, %s96, %s97
    %p101 = pneg %p95
    %p102 = scmp.eq.s32.totalorder %s9, 1
    %p103 = por %p101, %p102
    %p104 = scmp.ne.s32.totalorder %s96, %s99
    %p105 = scmp.eq.s32.totalorder %s9, 0
    %p106 = por %p104, %p105
    %p107 = scmp.ne.s32.totalorder %s96, %s99
    %p108 = scmp.eq.s32.totalorder %s14, 1
    %p109 = por %p107, %p108
    %p110 = scmp.ne.s32.totalorder %s99, %s100
    %p111 = scmp.eq.s32.totalorder %s14, 0
    %p112 = por %p110, %p111
    %p113 = scmp.ne.s32.totalorder %s99, %s100
    %p114 = scmp.eq.s32.totalorder %s15, 1
    %p115 = por %p113, %p114
    %p117 = scmp.ne.s32.totalorder %s100, %s116
    %p118 = scmp.eq.s32.totalorder %s15, 0
    %p119 = por %p117, %p118
    %s120 = ssub.s32 %s16, %s35
    %s121 = ssub.s32 %s18, %s27
    %s122 = sor.u32 %s120, %s121
    %s123 = ssub.s32 %s17, %s31
    %s124 = sor.u32 %s122, %s123
    %p125 = scmp.eq.s32.totalorder %s124, 0
    %s127 = sadd.s32 %s126, 1
    %s128 = scalar_select %p125, %s126, %s127
    %p131 = pneg %p125
    %p132 = scmp.eq.s32.totalorder %s9, 1
    %p133 = por %p131, %p132
    %p134 = scmp.ne.s32.totalorder %s126, %s129
    %p135 = scmp.eq.s32.totalorder %s9, 0
    %p136 = por %p134, %p135
    %p137 = scmp.ne.s32.totalorder %s126, %s129
    %p138 = scmp.eq.s32.totalorder %s14, 1
    %p139 = por %p137, %p138
    %p140 = scmp.ne.s32.totalorder %s129, %s130
    %p141 = scmp.eq.s32.totalorder %s14, 0
    %p142 = por %p140, %p141
    %p143 = scmp.ne.s32.totalorder %s129, %s130
    %p144 = scmp.eq.s32.totalorder %s15, 1
    %p145 = por %p143, %p144
    %p147 = scmp.ne.s32.totalorder %s130, %s146
    %p148 = scmp.eq.s32.totalorder %s15, 0
    %p149 = por %p147, %p148
    %p150 = scmp.le.s32.totalorder 1, %s9
    %p151 = scmp.lt.s32.totalorder %s9, 3
    %p152 = pnand %p150, %p151
    %p153 = pneg %p152
    // Predicated region
    $region9: #{linear_layer_forward.1} parent=5 // pred_check
      _
    $region10: #{linear_layer_forward.1} parent=5 // pred_check_branch
      %155 = sbr.rel (%p152) target = $region12
    $region11: #{linear_layer_forward.1} parent=5 // pred_region
      %s156 = ssub.s32 %s9, 1
      // Predicated region
      $region13: #{linear_layer_forward.1} parent=11 // pred_check
        %p157 = pneg %p84
      $region14: #{linear_layer_forward.1} parent=11 // pred_check_branch
        %159 = sbr.rel (%p157) target = $region16
      $region15: #{linear_layer_forward.1} parent=11 // pred_region
        %s160 = smul.u32 2, %s20
        %p161 = scmp.lt.s32.totalorder %s19, 1
        %s162 = scalar_select %p161, %s19, 1
        %p163 = scmp.lt.s32.totalorder %s160, 1
        %s164 = scalar_select %p163, %s160, 1
        %s165 = smul.addr %s162, 32
        %s166 = sadd.s32 %s164, %s165
        %s167 = smul.addr %s166, 4
        %s168 = scalar_lea.vmem %s1, %s167
        %s169 = smul.u32 2, %s20
      $region16: #{linear_layer_forward.1} parent=11 // pred_fallthru
        _
      // Predicated region
      $region17: #{linear_layer_forward.1} parent=11 // pred_check
        %p170 = pneg %p112
      $region18: #{linear_layer_forward.1} parent=11 // pred_check_branch
        %172 = sbr.rel (%p170) target = $region20
      $region19: #{linear_layer_forward.1} parent=11 // pred_region
        %s173 = smul.u32 2, %s20
        %p174 = scmp.lt.s32.totalorder %s19, 1
        %s175 = scalar_select %p174, %s19, 1
        %p176 = scmp.lt.s32.totalorder %s173, 1
        %s177 = scalar_select %p176, %s173, 1
        %s178 = smul.addr %s175, 2
        %s179 = sadd.s32 %s177, %s178
        %s180 = scalar_lea.vmem %s2, %s179
        %s181 = smul.u32 2, %s20
      $region20: #{linear_layer_forward.1} parent=11 // pred_fallthru
        _
    $region12: #{linear_layer_forward.1} parent=5 // pred_fallthru
      _
    %p182 = scmp.lt.s32.totalorder %s9, 2
    // Predicated region
    $region21: #{linear_layer_forward.1} parent=5 // pred_check
      %p183 = pneg %p182
    $region22: #{linear_layer_forward.1} parent=5 // pred_check_branch
      %185 = sbr.rel (%p183) target = $region24
    $region23: #{linear_layer_forward.1} parent=5 // pred_region
      // Predicated region
      $region25: #{linear_layer_forward.1} parent=23 // pred_check
        %p186 = pneg %p50
      $region26: #{linear_layer_forward.1} parent=23 // pred_check_branch
        %188 = sbr.rel (%p186) target = $region28
      $region27: #{linear_layer_forward.1} parent=23 // pred_region
        %s189 = smul.u32 4, %s18
        %p190 = scmp.lt.s32.totalorder %s16, 1
        %s191 = scalar_select %p190, %s16, 1
        %p192 = scmp.lt.s32.totalorder %s189, 3
        %s193 = scalar_select %p192, %s189, 3
        %s194 = smul.addr %s191, 4
        %s195 = sadd.s32 %s193, %s194
        %s196 = smul.addr %s195, 8
        %s197 = scalar_lea.vmem %s0, %s196
        %s198 = smul.u32 4, %s18
      $region28: #{linear_layer_forward.1} parent=23 // pred_fallthru
        _
    $region24: #{linear_layer_forward.1} parent=5 // pred_fallthru
      _
    %p199 = scmp.le.s32.totalorder 1, %s9
    %p200 = scmp.lt.s32.totalorder %s9, 3
    %p201 = pnand %p199, %p200
    %p202 = pneg %p201
    // Predicated region
    $region29: #{linear_layer_forward.1} parent=5 // pred_check
      _
    $region30: #{linear_layer_forward.1} parent=5 // pred_check_branch
      %204 = sbr.rel (%p201) target = $region32
    $region31: #{linear_layer_forward.1} parent=5 // pred_region
      %s205 = ssub.s32 %s9, 1
      %s206 = smul.u32 4, %s21
      %p207 = scmp.lt.s32.totalorder %s19, 1
      %s208 = scalar_select %p207, %s19, 1
      %p209 = scmp.lt.s32.totalorder %s206, 3
      %s210 = scalar_select %p209, %s206, 3
      %s211 = smul.addr %s208, 4
      %s212 = sadd.s32 %s210, %s211
      %s213 = smul.addr %s212, 8
      %s214 = scalar_lea.vmem %s0, %s213
      %p215 = pneg %p56
      %p216 = pneg %p53
      %s217 = smul.u32 2, %s20
      %p218 = scmp.lt.s32.totalorder %s19, 1
      %s219 = scalar_select %p218, %s19, 1
      %p220 = scmp.lt.s32.totalorder %s217, 1
      %s221 = scalar_select %p220, %s217, 1
      %s222 = smul.addr %s219, 32
      %s223 = sadd.s32 %s221, %s222
      %s224 = smul.addr %s223, 4
      %s225 = scalar_lea.vmem %s1, %s224
      %p226 = pneg %p84
      %p227 = pneg %p81
      %s228 = smul.u32 2, %s20
      %p229 = scmp.lt.s32.totalorder %s19, 1
      %s230 = scalar_select %p229, %s19, 1
      %p231 = scmp.lt.s32.totalorder %s228, 1
      %s232 = scalar_select %p231, %s228, 1
      %s233 = smul.addr %s230, 2
      %s234 = sadd.s32 %s232, %s233
      %s235 = scalar_lea.vmem %s2, %s234
      %p236 = pneg %p112
      %p237 = pneg %p109
      %p238 = pneg %p142
      %p239 = pneg %p139
      %s240 = smul.u32 4, %s21
      %s241 = smul.u32 2, %s20
      %p242 = scmp.lt.s32.totalorder %s19, 1
      %s243 = scalar_select %p242, %s19, 1
      %p244 = scmp.lt.s32.totalorder %s240, 3
      %s245 = scalar_select %p244, %s240, 3
      %p246 = scmp.lt.s32.totalorder %s241, 1
      %s247 = scalar_select %p246, %s241, 1
      %s248 = smul.addr %s245, 2
      %s249 = sadd.s32 %s247, %s248
      %s250 = smul.addr %s243, 8
      %s251 = sadd.s32 %s249, %s250
      %s252 = smul.addr %s251, 8
      %s253 = scalar_lea.vmem %s3, %s252
      %s254 = smul.u32 4, %s21
      %p255 = scmp.lt.s32.totalorder %s19, 1
      %s256 = scalar_select %p255, %s19, 1
      %p257 = scmp.lt.s32.totalorder %s254, 3
      %s258 = scalar_select %p257, %s254, 3
      %s259 = smul.addr %s256, 4
      %s260 = sadd.s32 %s258, %s259
      %s261 = smul.addr %s260, 8
      %s262 = scalar_lea.vmem %s0, %s261
      %s263 = smul.u32 4, %s21
      %s264 = smul.u32 2, %s20
      %p265 = scmp.lt.s32.totalorder %s19, 1
      %s266 = scalar_select %p265, %s19, 1
      %p267 = scmp.lt.s32.totalorder %s264, 1
      %s268 = scalar_select %p267, %s264, 1
      %s269 = smul.addr %s266, 32
      %s270 = sadd.s32 %s268, %s269
      %s271 = smul.addr %s270, 4
      %s272 = scalar_lea.vmem %s1, %s271
      %s273 = smul.u32 2, %s20
      %s274 = smul.u32 2, %s20
      %p275 = scmp.lt.s32.totalorder %s19, 1
      %s276 = scalar_select %p275, %s19, 1
      %p277 = scmp.lt.s32.totalorder %s274, 1
      %s278 = scalar_select %p277, %s274, 1
      %s279 = smul.addr %s276, 2
      %s280 = sadd.s32 %s278, %s279
      %s281 = scalar_lea.vmem %s2, %s280
      %s282 = smul.u32 2, %s20
      %s283 = smul.u32 4, %s21
      %s284 = smul.u32 2, %s20
      %p285 = scmp.lt.s32.totalorder %s19, 1
      %s286 = scalar_select %p285, %s19, 1
      %p287 = scmp.lt.s32.totalorder %s283, 3
      %s288 = scalar_select %p287, %s283, 3
      %p289 = scmp.lt.s32.totalorder %s284, 1
      %s290 = scalar_select %p289, %s284, 1
      %s291 = smul.addr %s288, 2
      %s292 = sadd.s32 %s290, %s291
      %s293 = smul.addr %s286, 8
      %s294 = sadd.s32 %s292, %s293
      %s295 = smul.addr %s294, 8
      %s296 = scalar_lea.vmem %s3, %s295
      %s297 = smul.u32 4, %s21
      %s298 = smul.u32 2, %s20
      %v300 = vld [vmem:[%s262] sm:$0xff]
      %v301 = vld [vmem:[%s262 + $0x8] sm:$0xff]
      %v302 = vld [vmem:[%s262 + $0x10] sm:$0xff]
      %v303 = vld [vmem:[%s262 + $0x18] sm:$0xff]
      %v304 = vpack.c.bf16 %v301, %v300
      %v305 = vpack.c.bf16 %v303, %v302
      %v306 = vld [vmem:[%s272] sm:$0xff]
      %v307 = vld [vmem:[%s272 + $0x8] sm:$0xff]
      %v308 = vld [vmem:[%s272 + $0x10] sm:$0xff]
      %v309 = vld [vmem:[%s272 + $0x18] sm:$0xff]
      %v310 = vld [vmem:[%s272 + $0x20] sm:$0xff]
      %v311 = vld [vmem:[%s272 + $0x28] sm:$0xff]
      %v312 = vld [vmem:[%s272 + $0x30] sm:$0xff]
      %v313 = vld [vmem:[%s272 + $0x38] sm:$0xff]
      %v314 = vld [vmem:[%s272 + $0x40] sm:$0xff]
      %v315 = vld [vmem:[%s272 + $0x48] sm:$0xff]
      %v316 = vld [vmem:[%s272 + $0x50] sm:$0xff]
      %v317 = vld [vmem:[%s272 + $0x58] sm:$0xff]
      %v318 = vld [vmem:[%s272 + $0x60] sm:$0xff]
      %v319 = vld [vmem:[%s272 + $0x68] sm:$0xff]
      %v320 = vld [vmem:[%s272 + $0x70] sm:$0xff]
      %v321 = vld [vmem:[%s272 + $0x78] sm:$0xff]
      %v322 = vld [vmem:[%s281] sm:$0x3]
      %v324 = vlaneseq
      %v325 = vshrl.u32 %v324, 7
      %v326 = vsub.s32 0, %v325
      %v327 = vrot.slane %v322, %v326
      %v328 = vlaneseq
      %v329 = vshrl.u32 %v328, 7
      %v330 = vsub.s32 1, %v329
      %v331 = vrot.slane %v322, %v330
      %v350 = vunpack.c.l.b16 %v306
      %v351 = vunpack.c.h.b16 %v306
      %v352 = vunpack.c.l.b16 %v307
      %v353 = vunpack.c.h.b16 %v307
      %v354 = vunpack.c.l.b16 %v308
      %v355 = vunpack.c.h.b16 %v308
      %v356 = vunpack.c.l.b16 %v309
      %v357 = vunpack.c.h.b16 %v309
      %v358 = vunpack.c.l.b16 %v310
      %v359 = vunpack.c.h.b16 %v310
      %v360 = vunpack.c.l.b16 %v311
      %v361 = vunpack.c.h.b16 %v311
      %v362 = vunpack.c.l.b16 %v312
      %v363 = vunpack.c.h.b16 %v312
      %v364 = vunpack.c.l.b16 %v313
      %v365 = vunpack.c.h.b16 %v313
      %v366 = vunpack.c.l.b16 %v314
      %v367 = vunpack.c.h.b16 %v314
      %v368 = vunpack.c.l.b16 %v315
      %v369 = vunpack.c.h.b16 %v315
      %v370 = vunpack.c.l.b16 %v316
      %v371 = vunpack.c.h.b16 %v316
      %v372 = vunpack.c.l.b16 %v317
      %v373 = vunpack.c.h.b16 %v317
      %v374 = vunpack.c.l.b16 %v318
      %v375 = vunpack.c.h.b16 %v318
      %v376 = vunpack.c.l.b16 %v319
      %v377 = vunpack.c.h.b16 %v319
      %v378 = vunpack.c.l.b16 %v320
      %v379 = vunpack.c.h.b16 %v320
      %v380 = vunpack.c.l.b16 %v321
      %v381 = vunpack.c.h.b16 %v321
      %v382 = vpack.c.b16 %v352, %v350
      %v383 = vpack.c.b16 %v353, %v351
      %v384 = vpack.c.b16 %v356, %v354
      %v385 = vpack.c.b16 %v357, %v355
      %v386 = vpack.c.b16 %v360, %v358
      %v387 = vpack.c.b16 %v361, %v359
      %v388 = vpack.c.b16 %v364, %v362
      %v389 = vpack.c.b16 %v365, %v363
      %v390 = vpack.c.b16 %v368, %v366
      %v391 = vpack.c.b16 %v369, %v367
      %v392 = vpack.c.b16 %v372, %v370
      %v393 = vpack.c.b16 %v373, %v371
      %v394 = vpack.c.b16 %v376, %v374
      %v395 = vpack.c.b16 %v377, %v375
      %v396 = vpack.c.b16 %v380, %v378
      %v397 = vpack.c.b16 %v381, %v379
      %414 = vmatprep.subr.bf16.mxu0 %v383
      %415 = vmatpush1.bf16.msra.mxu0 %v382
      %416 = vmatprep.subr.bf16.mxu0 %v385
      %417 = vmatpush1.bf16.msra.mxu0 %v384
      %418 = vmatprep.subr.bf16.mxu0 %v387
      %419 = vmatpush1.bf16.msra.mxu0 %v386
      %420 = vmatprep.subr.bf16.mxu0 %v389
      %421 = vmatpush1.bf16.msra.mxu0 %v388
      %422 = vmatprep.subr.bf16.mxu0 %v391
      %423 = vmatpush1.bf16.msra.mxu0 %v390
      %424 = vmatprep.subr.bf16.mxu0 %v393
      %425 = vmatpush1.bf16.msra.mxu0 %v392
      %426 = vmatprep.subr.bf16.mxu0 %v395
      %427 = vmatpush1.bf16.msra.mxu0 %v394
      %428 = vmatprep.subr.bf16.mxu0 %v397
      %429 = vmatpush1.bf16.msra.mxu0 %v396
      %430 = vmatprep.subr.bf16.mxu0 0
      %431 = vmatpush1.bf16.msra.mxu0 0
      %432 = vmatprep.subr.bf16.mxu0 0
      %433 = vmatpush1.bf16.msra.mxu0 0
      %434 = vmatprep.subr.bf16.mxu0 0
      %435 = vmatpush1.bf16.msra.mxu0 0
      %436 = vmatprep.subr.bf16.mxu0 0
      %437 = vmatpush1.bf16.msra.mxu0 0
      %438 = vmatprep.subr.bf16.mxu0 0
      %439 = vmatpush1.bf16.msra.mxu0 0
      %440 = vmatprep.subr.bf16.mxu0 0
      %441 = vmatpush1.bf16.msra.mxu0 0
      %442 = vmatprep.subr.bf16.mxu0 0
      %443 = vmatpush1.bf16.msra.mxu0 0
      %444 = vmatprep.subr.bf16.mxu0 0
      %445 = vmatpush1.bf16.msra.mxu0 0
      %446 = vmatprep.mubr.bf16.mxu0 0
      %447 = vmatmul.mubr.bf16.gmra.mrb[0].mxu0 %v304
      %v448 = vpop.f32.mrb[0].mxu0
      %v449 = vadd.f32 %v327, %v448
      %v450 = vpop.f32.mrb[0].mxu0
      %v451 = vadd.f32 %v331, %v450
      %v452 = vpop.f32.mrb[0].mxu0
      %v453 = vadd.f32 %v327, %v452
      %v454 = vpop.f32.mrb[0].mxu0
      %v455 = vadd.f32 %v331, %v454
      %456 = vmatprep.mubr.bf16.mxu0 0
      %457 = vmatmul.mubr.bf16.gmra.mrb[0].mxu0 %v305
      %v458 = vpop.f32.mrb[0].mxu0
      %v459 = vadd.f32 %v327, %v458
      %v460 = vpop.f32.mrb[0].mxu0
      %v461 = vadd.f32 %v331, %v460
      %v462 = vpop.f32.mrb[0].mxu0
      %v463 = vadd.f32 %v327, %v462
      %v464 = vpop.f32.mrb[0].mxu0
      %v465 = vadd.f32 %v331, %v464
      %466 = vdwg.mxu0
      %467 = vst [vmem:[%s296] sm:$0xff] %v449
      %468 = vst [vmem:[%s296 + $0x8] sm:$0xff] %v451
      %469 = vst [vmem:[%s296 + $0x10] sm:$0xff] %v453
      %470 = vst [vmem:[%s296 + $0x18] sm:$0xff] %v455
      %471 = vst [vmem:[%s296 + $0x20] sm:$0xff] %v459
      %472 = vst [vmem:[%s296 + $0x28] sm:$0xff] %v461
      %473 = vst [vmem:[%s296 + $0x30] sm:$0xff] %v463
      %474 = vst [vmem:[%s296 + $0x38] sm:$0xff] %v465
      %s475 = smul.u32 4, %s21
      %s476 = smul.u32 2, %s20
      %p477 = scmp.lt.s32.totalorder %s19, 1
      %s478 = scalar_select %p477, %s19, 1
      %p479 = scmp.lt.s32.totalorder %s475, 3
      %s480 = scalar_select %p479, %s475, 3
      %p481 = scmp.lt.s32.totalorder %s476, 1
      %s482 = scalar_select %p481, %s476, 1
      %s483 = smul.addr %s480, 2
      %s484 = sadd.s32 %s482, %s483
      %s485 = smul.addr %s478, 8
      %s486 = sadd.s32 %s484, %s485
      %s487 = smul.addr %s486, 8
      %s488 = scalar_lea.vmem %s3, %s487
      // Predicated region
      $region33: #{linear_layer_forward.1} parent=31 // pred_check
        %p489 = pneg %p139
      $region34: #{linear_layer_forward.1} parent=31 // pred_check_branch
        %491 = sbr.rel (%p489) target = $region36
      $region35: #{linear_layer_forward.1} parent=31 // pred_region
        %s492 = smul.u32 4, %s21
        %s493 = smul.u32 2, %s20
      $region36: #{linear_layer_forward.1} parent=31 // pred_fallthru
        _
    $region32: #{linear_layer_forward.1} parent=5 // pred_fallthru
      _
    %p494 = scmp.le.s32.totalorder 2, %s9
    // Predicated region
    $region37: #{linear_layer_forward.1} parent=5 // pred_check
      %p495 = pneg %p494
    $region38: #{linear_layer_forward.1} parent=5 // pred_check_branch
      %497 = sbr.rel (%p495) target = $region40
    $region39: #{linear_layer_forward.1} parent=5 // pred_region
      %s498 = ssub.s32 %s9, 2
      // Predicated region
      $region41: #{linear_layer_forward.1} parent=39 // pred_check
        %p499 = pneg %p145
      $region42: #{linear_layer_forward.1} parent=39 // pred_check_branch
        %501 = sbr.rel (%p499) target = $region44
      $region43: #{linear_layer_forward.1} parent=39 // pred_region
        %s502 = smul.u32 4, %s24
        %s503 = smul.u32 2, %s23
        %p504 = scmp.lt.s32.totalorder %s22, 1
        %s505 = scalar_select %p504, %s22, 1
        %p506 = scmp.lt.s32.totalorder %s502, 3
        %s507 = scalar_select %p506, %s502, 3
        %p508 = scmp.lt.s32.totalorder %s503, 1
        %s509 = scalar_select %p508, %s503, 1
        %s510 = smul.addr %s507, 2
        %s511 = sadd.s32 %s509, %s510
        %s512 = smul.addr %s505, 8
        %s513 = sadd.s32 %s511, %s512
        %s514 = smul.addr %s513, 8
        %s515 = scalar_lea.vmem %s3, %s514
      $region44: #{linear_layer_forward.1} parent=39 // pred_fallthru
        _
    $region40: #{linear_layer_forward.1} parent=5 // pred_fallthru
      _
  $region6: #{linear_layer_forward.1} parent=0 // loop_footer
    %s13 = sadd.s32 1, %s9
  $region7: #{linear_layer_forward.1} parent=0 // loop_footer_branch
    %8 = sbr.rel target = $region3
  $region8: #{linear_layer_forward.1} parent=0 // loop_exit
    _

</llo_original>
